<compile_context>
chip_gen: v5e
topology: v5e:2x2
jax: 0.10.0
libtpu: 0.0.40
codegen_flags: <defaults>
</compile_context>

<pallas_src>
import functools

import jax
import jax.numpy as jnp
from jax.experimental import pallas as pl
from jax.experimental.pallas import tpu as pltpu


# ---------------------------------------------------------------------------
# Kernel 1: masked bidirectional LSTM (both directions in one sequential grid)
# ---------------------------------------------------------------------------
def _bilstm_kernel(xf_ref, xb_ref, mf_ref, mb_ref,
                   wif_ref, whf_ref, bf_ref,
                   wib_ref, whb_ref, bb_ref,
                   of_ref, ob_ref,
                   hf, cf, hb, cb, *, hidden):
    t = pl.program_id(0)

    @pl.when(t == 0)
    def _():
        hf[...] = jnp.zeros_like(hf)
        cf[...] = jnp.zeros_like(cf)
        hb[...] = jnp.zeros_like(hb)
        cb[...] = jnp.zeros_like(cb)

    def step(x, m, h_ref, c_ref, w_ih, w_hh, b):
        # x: (B, IN), m: (B, 1). PyTorch nn.LSTM gate order: i, f, g, o.
        gates = (jnp.dot(x, w_ih, preferred_element_type=jnp.float32)
                 + jnp.dot(h_ref[...], w_hh, preferred_element_type=jnp.float32)
                 + b)
        i_g = jax.nn.sigmoid(gates[:, 0 * hidden:1 * hidden])
        f_g = jax.nn.sigmoid(gates[:, 1 * hidden:2 * hidden])
        g_g = jnp.tanh(gates[:, 2 * hidden:3 * hidden])
        o_g = jax.nn.sigmoid(gates[:, 3 * hidden:4 * hidden])
        c_new = f_g * c_ref[...] + i_g * g_g
        h_new = o_g * jnp.tanh(c_new)
        valid = m > 0.0
        # Packed-sequence semantics: state frozen / output zero at pad steps.
        c_ref[...] = jnp.where(valid, c_new, c_ref[...])
        h_ref[...] = jnp.where(valid, h_new, h_ref[...])
        return jnp.where(valid, h_new, jnp.zeros_like(h_new))

    of_ref[0] = step(xf_ref[0], mf_ref[0], hf, cf,
                     wif_ref[...], whf_ref[...], bf_ref[...])
    ob_ref[0] = step(xb_ref[0], mb_ref[0], hb, cb,
                     wib_ref[...], whb_ref[...], bb_ref[...])


def bilstm_encode(mod, mask, params):
    """RNNEncoder at inference: masked bidirectional LSTM over `mod`.

    mod: (B, S, 2h) f32, mask: (B, S) f32 prefix mask -> (B, S, 2h) f32.
    """
    # TODO(synk): dropout in RNNEncoder is a no-op at inference (eval mode).
    B, S, in_dim = mod.shape
    h = params["hidden_size"]
    H4 = 4 * h

    x_t = jnp.transpose(mod, (1, 0, 2))                 # time-major (S, B, IN)
    m_t = jnp.transpose(mask, (1, 0))[:, :, None]       # (S, B, 1)

    wif = jnp.transpose(params["w_ih_f"])               # (IN, 4h)
    whf = jnp.transpose(params["w_hh_f"])               # (h, 4h)
    bf = (params["b_ih_f"] + params["b_hh_f"]).reshape(1, H4)
    wib = jnp.transpose(params["w_ih_b"])
    whb = jnp.transpose(params["w_hh_b"])
    bb = (params["b_ih_b"] + params["b_hh_b"]).reshape(1, H4)

    kernel = functools.partial(_bilstm_kernel, hidden=h)
    out_f, out_b = pl.pallas_call(
        kernel,
        out_shape=(jax.ShapeDtypeStruct((S, B, h), jnp.float32),
                   jax.ShapeDtypeStruct((S, B, h), jnp.float32)),
        grid_spec=pltpu.PrefetchScalarGridSpec(
            num_scalar_prefetch=0,
            grid=(S,),
            in_specs=[
                pl.BlockSpec((1, B, in_dim), lambda t: (t, 0, 0)),           # x fwd
                pl.BlockSpec((1, B, in_dim), lambda t: (S - 1 - t, 0, 0)),   # x bwd
                pl.BlockSpec((1, B, 1), lambda t: (t, 0, 0)),                # mask fwd
                pl.BlockSpec((1, B, 1), lambda t: (S - 1 - t, 0, 0)),        # mask bwd
                pl.BlockSpec((in_dim, H4), lambda t: (0, 0)),                # resident
                pl.BlockSpec((h, H4), lambda t: (0, 0)),
                pl.BlockSpec((1, H4), lambda t: (0, 0)),
                pl.BlockSpec((in_dim, H4), lambda t: (0, 0)),
                pl.BlockSpec((h, H4), lambda t: (0, 0)),
                pl.BlockSpec((1, H4), lambda t: (0, 0)),
            ],
            out_specs=[
                pl.BlockSpec((1, B, h), lambda t: (t, 0, 0)),
                pl.BlockSpec((1, B, h), lambda t: (S - 1 - t, 0, 0)),
            ],
            scratch_shapes=[pltpu.VMEM((B, h), jnp.float32)] * 4,
        ),
        compiler_params=pltpu.CompilerParams(
            dimension_semantics=("arbitrary",)),   # sequential recurrence
    )(x_t, x_t, m_t, m_t, wif, whf, bf, wib, whb, bb)

    mod_2 = jnp.concatenate(
        [jnp.transpose(out_f, (1, 0, 2)), jnp.transpose(out_b, (1, 0, 2))],
        axis=-1)
    return mod_2


# ---------------------------------------------------------------------------
# Kernel 2: fused logits (4 linears) + masked log-softmax for both pointers
# ---------------------------------------------------------------------------
def _output_kernel(att_ref, mod_ref, mod2_ref, mask_ref,
                   wa1_ref, wm1_ref, b1_ref,
                   wa2_ref, wm2_ref, b2_ref,
                   lp1_ref, lp2_ref):
    att = att_ref[0]        # (S, 8H)
    mod = mod_ref[0]        # (S, 2H)
    mod2 = mod2_ref[0]      # (S, 2H)
    mask = mask_ref[0]      # (S, 1)
    s = att.shape[0]

    logits1 = (jnp.dot(att, wa1_ref[...], preferred_element_type=jnp.float32)
               + jnp.dot(mod, wm1_ref[...], preferred_element_type=jnp.float32)
               + b1_ref[...])                                     # (S, 1)
    logits2 = (jnp.dot(att, wa2_ref[...], preferred_element_type=jnp.float32)
               + jnp.dot(mod2, wm2_ref[...], preferred_element_type=jnp.float32)
               + b2_ref[...])                                     # (S, 1)

    def masked_log_softmax(logits):                               # over S
        masked = jnp.where(mask > 0.0, logits, -1e30)
        m = jnp.max(masked, axis=0, keepdims=True)
        z = masked - m
        lse = jnp.log(jnp.sum(jnp.exp(z), axis=0, keepdims=True))
        return z - lse

    lp1_ref[...] = masked_log_softmax(logits1).reshape(1, s, 1)
    lp2_ref[...] = masked_log_softmax(logits2).reshape(1, s, 1)


def output_pointers(att, mod, mod_2, mask, params):
    B, S, H8 = att.shape
    H2 = mod.shape[-1]

    b1 = (params["ba1"] + params["bm1"]).reshape(1, 1)
    b2 = (params["ba2"] + params["bm2"]).reshape(1, 1)
    mask3 = mask[:, :, None]                                      # (B, S, 1)

    lp1, lp2 = pl.pallas_call(
        _output_kernel,
        out_shape=(jax.ShapeDtypeStruct((B, S, 1), jnp.float32),
                   jax.ShapeDtypeStruct((B, S, 1), jnp.float32)),
        grid_spec=pltpu.PrefetchScalarGridSpec(
            num_scalar_prefetch=0,
            grid=(B,),
            in_specs=[
                pl.BlockSpec((1, S, H8), lambda b: (b, 0, 0)),
                pl.BlockSpec((1, S, H2), lambda b: (b, 0, 0)),
                pl.BlockSpec((1, S, H2), lambda b: (b, 0, 0)),
                pl.BlockSpec((1, S, 1), lambda b: (b, 0, 0)),
                pl.BlockSpec((H8, 1), lambda b: (0, 0)),          # resident weights
                pl.BlockSpec((H2, 1), lambda b: (0, 0)),
                pl.BlockSpec((1, 1), lambda b: (0, 0)),
                pl.BlockSpec((H8, 1), lambda b: (0, 0)),
                pl.BlockSpec((H2, 1), lambda b: (0, 0)),
                pl.BlockSpec((1, 1), lambda b: (0, 0)),
            ],
            out_specs=[
                pl.BlockSpec((1, S, 1), lambda b: (b, 0, 0)),
                pl.BlockSpec((1, S, 1), lambda b: (b, 0, 0)),
            ],
        ),
        compiler_params=pltpu.CompilerParams(
            dimension_semantics=("parallel",)),
    )(att, mod, mod_2, mask3,
      params["wa1"], params["wm1"], b1,
      params["wa2"], params["wm2"], b2)

    return lp1[..., 0], lp2[..., 0]


def bidaf_output_forward(att, mod, mask, params):
    """Full BiDAFOutput.forward (inference). Returns (log_p1, log_p2)."""
    mod_2 = bilstm_encode(mod, mask, params)
    return output_pointers(att, mod, mod_2, mask, params)


# ---------------------------------------------------------------------------
# Pure-JAX reference mirroring the PyTorch forward
# ---------------------------------------------------------------------------
def _reference_forward(att, mod, mask, params):
    h = params["hidden_size"]
    B, S, _ = mod.shape

    def lstm_dir(x_seq, m_seq, w_ih, w_hh, b_ih, b_hh):
        hh = jnp.zeros((B, h), jnp.float32)
        cc = jnp.zeros((B, h), jnp.float32)
        outs = []
        for t in range(S):
            x_t = x_seq[:, t, :]
            gates = x_t @ w_ih.T + hh @ w_hh.T + b_ih + b_hh
            i_g, f_g, g_g, o_g = jnp.split(gates, 4, axis=-1)
            i_g = jax.nn.sigmoid(i_g)
            f_g = jax.nn.sigmoid(f_g)
            g_g = jnp.tanh(g_g)
            o_g = jax.nn.sigmoid(o_g)
            c_new = f_g * cc + i_g * g_g
            h_new = o_g * jnp.tanh(c_new)
            valid = m_seq[:, t:t + 1] > 0
            hh = jnp.where(valid, h_new, hh)
            cc = jnp.where(valid, c_new, cc)
            outs.append(jnp.where(valid, h_new, jnp.zeros_like(h_new)))
        return jnp.stack(outs, axis=1)

    out_f = lstm_dir(mod, mask,
                     params["w_ih_f"], params["w_hh_f"],
                     params["b_ih_f"], params["b_hh_f"])
    out_b = lstm_dir(mod[:, ::-1, :], mask[:, ::-1],
                     params["w_ih_b"], params["w_hh_b"],
                     params["b_ih_b"], params["b_hh_b"])[:, ::-1, :]
    mod_2 = jnp.concatenate([out_f, out_b], axis=-1)

    logits1 = att @ params["wa1"] + params["ba1"] + mod @ params["wm1"] + params["bm1"]
    logits2 = att @ params["wa2"] + params["ba2"] + mod_2 @ params["wm2"] + params["bm2"]

    def masked_log_softmax(lg, msk):          # lg, msk: (B, S)
        masked = msk * lg + (1.0 - msk) * (-1e30)
        return jax.nn.log_softmax(masked, axis=-1)

    return (masked_log_softmax(logits1[..., 0], mask),
            masked_log_softmax(logits2[..., 0], mask),
            mod_2)


if __name__ == "__main__":
    key = jax.random.PRNGKey(0)
    B, S, hidden = 2, 16, 32
    H2, H4, H8 = 2 * hidden, 4 * hidden, 8 * hidden

    ks = jax.random.split(key, 20)
    att = jax.random.normal(ks[0], (B, S, H8), jnp.float32)
    mod = jax.random.normal(ks[1], (B, S, H2), jnp.float32)
    lengths = jnp.array([S, S - 5], dtype=jnp.int32)
    mask = (jnp.arange(S)[None, :] < lengths[:, None]).astype(jnp.float32)

    sc = 0.1
    params = dict(
        hidden_size=hidden,
        # Linear(8h,1) / Linear(2h,1) weights stored already transposed (in, 1).
        wa1=sc * jax.random.normal(ks[2], (H8, 1), jnp.float32),
        ba1=sc * jax.random.normal(ks[3], (1,), jnp.float32),
        wm1=sc * jax.random.normal(ks[4], (H2, 1), jnp.float32),
        bm1=sc * jax.random.normal(ks[5], (1,), jnp.float32),
        wa2=sc * jax.random.normal(ks[6], (H8, 1), jnp.float32),
        ba2=sc * jax.random.normal(ks[7], (1,), jnp.float32),
        wm2=sc * jax.random.normal(ks[8], (H2, 1), jnp.float32),
        bm2=sc * jax.random.normal(ks[9], (1,), jnp.float32),
        # nn.LSTM parameter layout, gate order (i, f, g, o); _f fwd, _b reverse.
        w_ih_f=sc * jax.random.normal(ks[10], (H4, H2), jnp.float32),
        w_hh_f=sc * jax.random.normal(ks[11], (H4, hidden), jnp.float32),
        b_ih_f=sc * jax.random.normal(ks[12], (H4,), jnp.float32),
        b_hh_f=sc * jax.random.normal(ks[13], (H4,), jnp.float32),
        w_ih_b=sc * jax.random.normal(ks[14], (H4, H2), jnp.float32),
        w_hh_b=sc * jax.random.normal(ks[15], (H4, hidden), jnp.float32),
        b_ih_b=sc * jax.random.normal(ks[16], (H4,), jnp.float32),
        b_hh_b=sc * jax.random.normal(ks[17], (H4,), jnp.float32),
    )

    log_p1, log_p2 = bidaf_output_forward(att, mod, mask, params)
    log_p1, log_p2 = jax.block_until_ready((log_p1, log_p2))

    assert log_p1.shape == (B, S) and log_p2.shape == (B, S), (log_p1.shape, log_p2.shape)

    ref_p1, ref_p2, ref_mod2 = _reference_forward(att, mod, mask, params)
    mod_2 = jax.block_until_ready(bilstm_encode(mod, mask, params))

    assert jnp.allclose(mod_2, ref_mod2, atol=1e-4, rtol=1e-4), \
        float(jnp.abs(mod_2 - ref_mod2).max())
    assert jnp.allclose(log_p1, ref_p1, atol=1e-3, rtol=1e-3), \
        float(jnp.abs(log_p1 - ref_p1).max())
    assert jnp.allclose(log_p2, ref_p2, atol=1e-3, rtol=1e-3), \
        float(jnp.abs(log_p2 - ref_p2).max())
    # Sanity: per-row probabilities over valid positions sum to 1.
    assert jnp.allclose(jnp.sum(jnp.exp(log_p1), axis=-1), 1.0, atol=1e-3)
    assert jnp.allclose(jnp.sum(jnp.exp(log_p2), axis=-1), 1.0, atol=1e-3)

    print("KERNEL_OK")
</pallas_src>

<mosaic_0001>
module attributes {stable_mosaic.version = 11 : i64} {
  func.func @_bilstm_kernel(%arg0: i32, %arg1: memref<1x2x64xf32, #tpu.memory_space<vmem>>, %arg2: memref<1x2x64xf32, #tpu.memory_space<vmem>>, %arg3: memref<1x2x1xf32, #tpu.memory_space<vmem>>, %arg4: memref<1x2x1xf32, #tpu.memory_space<vmem>>, %arg5: memref<64x128xf32, #tpu.memory_space<vmem>>, %arg6: memref<32x128xf32, #tpu.memory_space<vmem>>, %arg7: memref<1x128xf32, #tpu.memory_space<vmem>>, %arg8: memref<64x128xf32, #tpu.memory_space<vmem>>, %arg9: memref<32x128xf32, #tpu.memory_space<vmem>>, %arg10: memref<1x128xf32, #tpu.memory_space<vmem>>, %arg11: memref<1x2x32xf32, #tpu.memory_space<vmem>>, %arg12: memref<1x2x32xf32, #tpu.memory_space<vmem>>, %arg13: memref<2x32xf32, #tpu.memory_space<vmem>>, %arg14: memref<2x32xf32, #tpu.memory_space<vmem>>, %arg15: memref<2x32xf32, #tpu.memory_space<vmem>>, %arg16: memref<2x32xf32, #tpu.memory_space<vmem>>) attributes {dimension_semantics = [#tpu.dimension_semantics<arbitrary>], iteration_bounds = array<i64: 16>, scalar_prefetch = 0 : i64, scratch_operands = 4 : i64, tpu.core_type = #tpu.core_type<tc>, window_params = [{transform_indices = @transform_0, window_bounds = array<i64: 1, 2, 64>}, {transform_indices = @transform_1, window_bounds = array<i64: 1, 2, 64>}, {transform_indices = @transform_2, window_bounds = array<i64: 1, 2, 1>}, {transform_indices = @transform_3, window_bounds = array<i64: 1, 2, 1>}, {pipeline_mode = #tpu.pipeline_mode<synchronous>, transform_indices = @transform_4, window_bounds = array<i64: 64, 128>}, {pipeline_mode = #tpu.pipeline_mode<synchronous>, transform_indices = @transform_5, window_bounds = array<i64: 32, 128>}, {pipeline_mode = #tpu.pipeline_mode<synchronous>, transform_indices = @transform_6, window_bounds = array<i64: 1, 128>}, {pipeline_mode = #tpu.pipeline_mode<synchronous>, transform_indices = @transform_7, window_bounds = array<i64: 64, 128>}, {pipeline_mode = #tpu.pipeline_mode<synchronous>, transform_indices = @transform_8, window_bounds = array<i64: 32, 128>}, {pipeline_mode = #tpu.pipeline_mode<synchronous>, transform_indices = @transform_9, window_bounds = array<i64: 1, 128>}, {transform_indices = @transform_10, window_bounds = array<i64: 1, 2, 32>}, {transform_indices = @transform_11, window_bounds = array<i64: 1, 2, 32>}]} {
    %c0_i32 = arith.constant 0 : i32
    %0 = arith.cmpi eq, %arg0, %c0_i32 : i32
    %1 = arith.extui %0 : i1 to i32
    %c0_i32_0 = arith.constant 0 : i32
    %2 = arith.cmpi ne, %1, %c0_i32_0 : i32
    scf.if %2 {
      %cst_67 = arith.constant 0.000000e+00 : f32
      %119 = vector.broadcast %cst_67 : f32 to vector<2x32xf32>
      %c0_68 = arith.constant 0 : index
      %c0_69 = arith.constant 0 : index
      %120 = vector.load %arg13[%c0_68, %c0_69] : memref<2x32xf32, #tpu.memory_space<vmem>>, vector<2x32xf32>
      tpu.vector_store %arg13[%c0_68, %c0_69], %119 {strides = array<i32>} : memref<2x32xf32, #tpu.memory_space<vmem>>, vector<2x32xf32>,
      %cst_70 = arith.constant 0.000000e+00 : f32
      %121 = vector.broadcast %cst_70 : f32 to vector<2x32xf32>
      %c0_71 = arith.constant 0 : index
      %c0_72 = arith.constant 0 : index
      %122 = vector.load %arg14[%c0_71, %c0_72] : memref<2x32xf32, #tpu.memory_space<vmem>>, vector<2x32xf32>
      tpu.vector_store %arg14[%c0_71, %c0_72], %121 {strides = array<i32>} : memref<2x32xf32, #tpu.memory_space<vmem>>, vector<2x32xf32>,
      %cst_73 = arith.constant 0.000000e+00 : f32
      %123 = vector.broadcast %cst_73 : f32 to vector<2x32xf32>
      %c0_74 = arith.constant 0 : index
      %c0_75 = arith.constant 0 : index
      %124 = vector.load %arg15[%c0_74, %c0_75] : memref<2x32xf32, #tpu.memory_space<vmem>>, vector<2x32xf32>
      tpu.vector_store %arg15[%c0_74, %c0_75], %123 {strides = array<i32>} : memref<2x32xf32, #tpu.memory_space<vmem>>, vector<2x32xf32>,
      %cst_76 = arith.constant 0.000000e+00 : f32
      %125 = vector.broadcast %cst_76 : f32 to vector<2x32xf32>
      %c0_77 = arith.constant 0 : index
      %c0_78 = arith.constant 0 : index
      %126 = vector.load %arg16[%c0_77, %c0_78] : memref<2x32xf32, #tpu.memory_space<vmem>>, vector<2x32xf32>
      tpu.vector_store %arg16[%c0_77, %c0_78], %125 {strides = array<i32>} : memref<2x32xf32, #tpu.memory_space<vmem>>, vector<2x32xf32>,
    } else {
    }
    %c0 = arith.constant 0 : index
    %c0_1 = arith.constant 0 : index
    %c0_2 = arith.constant 0 : index
    %3 = vector.load %arg1[%c0, %c0_1, %c0_2] : memref<1x2x64xf32, #tpu.memory_space<vmem>>, vector<1x2x64xf32>
    %4 = vector.shape_cast %3 : vector<1x2x64xf32> to vector<2x64xf32>
    %c0_3 = arith.constant 0 : index
    %c0_4 = arith.constant 0 : index
    %c0_5 = arith.constant 0 : index
    %5 = vector.load %arg3[%c0_3, %c0_4, %c0_5] : memref<1x2x1xf32, #tpu.memory_space<vmem>>, vector<1x2x1xf32>
    %6 = vector.shape_cast %5 : vector<1x2x1xf32> to vector<2x1xf32>
    %c0_6 = arith.constant 0 : index
    %c0_7 = arith.constant 0 : index
    %7 = vector.load %arg5[%c0_6, %c0_7] : memref<64x128xf32, #tpu.memory_space<vmem>>, vector<64x128xf32>
    %c0_8 = arith.constant 0 : index
    %c0_9 = arith.constant 0 : index
    %8 = vector.load %arg6[%c0_8, %c0_9] : memref<32x128xf32, #tpu.memory_space<vmem>>, vector<32x128xf32>
    %c0_10 = arith.constant 0 : index
    %c0_11 = arith.constant 0 : index
    %9 = vector.load %arg7[%c0_10, %c0_11] : memref<1x128xf32, #tpu.memory_space<vmem>>, vector<1x128xf32>
    %cst = arith.constant dense<0.000000e+00> : vector<2x128xf32>
    %10 = tpu.matmul %4, %7, %cst {dimension_numbers = #tpu.dot_dimension_numbers<[1], [0], [0], [1], [0, 0, 1, 1], [], []>} : vector<2x64xf32>, vector<64x128xf32>, vector<2x128xf32> -> vector<2x128xf32>
    %c0_12 = arith.constant 0 : index
    %c0_13 = arith.constant 0 : index
    %11 = vector.load %arg13[%c0_12, %c0_13] : memref<2x32xf32, #tpu.memory_space<vmem>>, vector<2x32xf32>
    %cst_14 = arith.constant dense<0.000000e+00> : vector<2x128xf32>
    %12 = tpu.matmul %11, %8, %cst_14 {dimension_numbers = #tpu.dot_dimension_numbers<[1], [0], [0], [1], [0, 0, 1, 1], [], []>} : vector<2x32xf32>, vector<32x128xf32>, vector<2x128xf32> -> vector<2x128xf32>
    %13 = arith.addf %10, %12 : vector<2x128xf32>
    %14 = vector.broadcast %9 : vector<1x128xf32> to vector<2x128xf32>
    %15 = arith.addf %13, %14 : vector<2x128xf32>
    %16 = vector.extract_strided_slice %15 {offsets = [0, 0], sizes = [2, 32], strides = [1, 1]} : vector<2x128xf32> to vector<2x32xf32>
    %17 = arith.negf %16 : vector<2x32xf32>
    %18 = math.exp %17 : vector<2x32xf32>
    %cst_15 = arith.constant 1.000000e+00 : f32
    %19 = vector.broadcast %cst_15 : f32 to vector<2x32xf32>
    %20 = arith.addf %19, %18 : vector<2x32xf32>
    %21 = arith.divf %19, %20 : vector<2x32xf32>
    %22 = vector.extract_strided_slice %15 {offsets = [0, 32], sizes = [2, 32], strides = [1, 1]} : vector<2x128xf32> to vector<2x32xf32>
    %23 = arith.negf %22 : vector<2x32xf32>
    %24 = math.exp %23 : vector<2x32xf32>
    %cst_16 = arith.constant 1.000000e+00 : f32
    %25 = vector.broadcast %cst_16 : f32 to vector<2x32xf32>
    %26 = arith.addf %25, %24 : vector<2x32xf32>
    %27 = arith.divf %25, %26 : vector<2x32xf32>
    %28 = vector.extract_strided_slice %15 {offsets = [0, 64], sizes = [2, 32], strides = [1, 1]} : vector<2x128xf32> to vector<2x32xf32>
    %29 = math.tanh %28 : vector<2x32xf32>
    %30 = vector.extract_strided_slice %15 {offsets = [0, 96], sizes = [2, 32], strides = [1, 1]} : vector<2x128xf32> to vector<2x32xf32>
    %31 = arith.negf %30 : vector<2x32xf32>
    %32 = math.exp %31 : vector<2x32xf32>
    %cst_17 = arith.constant 1.000000e+00 : f32
    %33 = vector.broadcast %cst_17 : f32 to vector<2x32xf32>
    %34 = arith.addf %33, %32 : vector<2x32xf32>
    %35 = arith.divf %33, %34 : vector<2x32xf32>
    %c0_18 = arith.constant 0 : index
    %c0_19 = arith.constant 0 : index
    %36 = vector.load %arg14[%c0_18, %c0_19] : memref<2x32xf32, #tpu.memory_space<vmem>>, vector<2x32xf32>
    %37 = arith.mulf %27, %36 : vector<2x32xf32>
    %38 = arith.mulf %21, %29 : vector<2x32xf32>
    %39 = arith.addf %37, %38 : vector<2x32xf32>
    %40 = math.tanh %39 : vector<2x32xf32>
    %41 = arith.mulf %35, %40 : vector<2x32xf32>
    %cst_20 = arith.constant 0.000000e+00 : f32
    %42 = vector.broadcast %cst_20 : f32 to vector<2x1xf32>
    %43 = arith.cmpf ogt, %6, %42 : vector<2x1xf32>
    %c0_21 = arith.constant 0 : index
    %c0_22 = arith.constant 0 : index
    %44 = vector.load %arg14[%c0_21, %c0_22] : memref<2x32xf32, #tpu.memory_space<vmem>>, vector<2x32xf32>
    %45 = vector.shape_cast %43 : vector<2x1xi1> to vector<2x1xi1>
    %46 = vector.broadcast %45 : vector<2x1xi1> to vector<2x32xi1>
    %47 = arith.select %46, %39, %44 : vector<2x32xi1>, vector<2x32xf32>
    %c0_23 = arith.constant 0 : index
    %c0_24 = arith.constant 0 : index
    %48 = vector.load %arg14[%c0_23, %c0_24] : memref<2x32xf32, #tpu.memory_space<vmem>>, vector<2x32xf32>
    tpu.vector_store %arg14[%c0_23, %c0_24], %47 {strides = array<i32>} : memref<2x32xf32, #tpu.memory_space<vmem>>, vector<2x32xf32>,
    %c0_25 = arith.constant 0 : index
    %c0_26 = arith.constant 0 : index
    %49 = vector.load %arg13[%c0_25, %c0_26] : memref<2x32xf32, #tpu.memory_space<vmem>>, vector<2x32xf32>
    %50 = vector.shape_cast %43 : vector<2x1xi1> to vector<2x1xi1>
    %51 = vector.broadcast %50 : vector<2x1xi1> to vector<2x32xi1>
    %52 = arith.select %51, %41, %49 : vector<2x32xi1>, vector<2x32xf32>
    %c0_27 = arith.constant 0 : index
    %c0_28 = arith.constant 0 : index
    %53 = vector.load %arg13[%c0_27, %c0_28] : memref<2x32xf32, #tpu.memory_space<vmem>>, vector<2x32xf32>
    tpu.vector_store %arg13[%c0_27, %c0_28], %52 {strides = array<i32>} : memref<2x32xf32, #tpu.memory_space<vmem>>, vector<2x32xf32>,
    %cst_29 = arith.constant 0.000000e+00 : f32
    %54 = vector.broadcast %cst_29 : f32 to vector<2x32xf32>
    %55 = vector.shape_cast %43 : vector<2x1xi1> to vector<2x1xi1>
    %56 = vector.broadcast %55 : vector<2x1xi1> to vector<2x32xi1>
    %57 = arith.select %56, %41, %54 : vector<2x32xi1>, vector<2x32xf32>
    %c0_30 = arith.constant 0 : index
    %c0_31 = arith.constant 0 : index
    %c0_32 = arith.constant 0 : index
    %58 = vector.load %arg11[%c0_30, %c0_31, %c0_32] : memref<1x2x32xf32, #tpu.memory_space<vmem>>, vector<1x2x32xf32>
    %59 = vector.shape_cast %58 : vector<1x2x32xf32> to vector<2x32xf32>
    %60 = vector.shape_cast %57 : vector<2x32xf32> to vector<1x2x32xf32>
    tpu.vector_store %arg11[%c0_30, %c0_31, %c0_32], %60 {strides = array<i32>} : memref<1x2x32xf32, #tpu.memory_space<vmem>>, vector<1x2x32xf32>,
    %c0_33 = arith.constant 0 : index
    %c0_34 = arith.constant 0 : index
    %c0_35 = arith.constant 0 : index
    %61 = vector.load %arg2[%c0_33, %c0_34, %c0_35] : memref<1x2x64xf32, #tpu.memory_space<vmem>>, vector<1x2x64xf32>
    %62 = vector.shape_cast %61 : vector<1x2x64xf32> to vector<2x64xf32>
    %c0_36 = arith.constant 0 : index
    %c0_37 = arith.constant 0 : index
    %c0_38 = arith.constant 0 : index
    %63 = vector.load %arg4[%c0_36, %c0_37, %c0_38] : memref<1x2x1xf32, #tpu.memory_space<vmem>>, vector<1x2x1xf32>
    %64 = vector.shape_cast %63 : vector<1x2x1xf32> to vector<2x1xf32>
    %c0_39 = arith.constant 0 : index
    %c0_40 = arith.constant 0 : index
    %65 = vector.load %arg8[%c0_39, %c0_40] : memref<64x128xf32, #tpu.memory_space<vmem>>, vector<64x128xf32>
    %c0_41 = arith.constant 0 : index
    %c0_42 = arith.constant 0 : index
    %66 = vector.load %arg9[%c0_41, %c0_42] : memref<32x128xf32, #tpu.memory_space<vmem>>, vector<32x128xf32>
    %c0_43 = arith.constant 0 : index
    %c0_44 = arith.constant 0 : index
    %67 = vector.load %arg10[%c0_43, %c0_44] : memref<1x128xf32, #tpu.memory_space<vmem>>, vector<1x128xf32>
    %cst_45 = arith.constant dense<0.000000e+00> : vector<2x128xf32>
    %68 = tpu.matmul %62, %65, %cst_45 {dimension_numbers = #tpu.dot_dimension_numbers<[1], [0], [0], [1], [0, 0, 1, 1], [], []>} : vector<2x64xf32>, vector<64x128xf32>, vector<2x128xf32> -> vector<2x128xf32>
    %c0_46 = arith.constant 0 : index
    %c0_47 = arith.constant 0 : index
    %69 = vector.load %arg15[%c0_46, %c0_47] : memref<2x32xf32, #tpu.memory_space<vmem>>, vector<2x32xf32>
    %cst_48 = arith.constant dense<0.000000e+00> : vector<2x128xf32>
    %70 = tpu.matmul %69, %66, %cst_48 {dimension_numbers = #tpu.dot_dimension_numbers<[1], [0], [0], [1], [0, 0, 1, 1], [], []>} : vector<2x32xf32>, vector<32x128xf32>, vector<2x128xf32> -> vector<2x128xf32>
    %71 = arith.addf %68, %70 : vector<2x128xf32>
    %72 = vector.broadcast %67 : vector<1x128xf32> to vector<2x128xf32>
    %73 = arith.addf %71, %72 : vector<2x128xf32>
    %74 = vector.extract_strided_slice %73 {offsets = [0, 0], sizes = [2, 32], strides = [1, 1]} : vector<2x128xf32> to vector<2x32xf32>
    %75 = arith.negf %74 : vector<2x32xf32>
    %76 = math.exp %75 : vector<2x32xf32>
    %cst_49 = arith.constant 1.000000e+00 : f32
    %77 = vector.broadcast %cst_49 : f32 to vector<2x32xf32>
    %78 = arith.addf %77, %76 : vector<2x32xf32>
    %79 = arith.divf %77, %78 : vector<2x32xf32>
    %80 = vector.extract_strided_slice %73 {offsets = [0, 32], sizes = [2, 32], strides = [1, 1]} : vector<2x128xf32> to vector<2x32xf32>
    %81 = arith.negf %80 : vector<2x32xf32>
    %82 = math.exp %81 : vector<2x32xf32>
    %cst_50 = arith.constant 1.000000e+00 : f32
    %83 = vector.broadcast %cst_50 : f32 to vector<2x32xf32>
    %84 = arith.addf %83, %82 : vector<2x32xf32>
    %85 = arith.divf %83, %84 : vector<2x32xf32>
    %86 = vector.extract_strided_slice %73 {offsets = [0, 64], sizes = [2, 32], strides = [1, 1]} : vector<2x128xf32> to vector<2x32xf32>
    %87 = math.tanh %86 : vector<2x32xf32>
    %88 = vector.extract_strided_slice %73 {offsets = [0, 96], sizes = [2, 32], strides = [1, 1]} : vector<2x128xf32> to vector<2x32xf32>
    %89 = arith.negf %88 : vector<2x32xf32>
    %90 = math.exp %89 : vector<2x32xf32>
    %cst_51 = arith.constant 1.000000e+00 : f32
    %91 = vector.broadcast %cst_51 : f32 to vector<2x32xf32>
    %92 = arith.addf %91, %90 : vector<2x32xf32>
    %93 = arith.divf %91, %92 : vector<2x32xf32>
    %c0_52 = arith.constant 0 : index
    %c0_53 = arith.constant 0 : index
    %94 = vector.load %arg16[%c0_52, %c0_53] : memref<2x32xf32, #tpu.memory_space<vmem>>, vector<2x32xf32>
    %95 = arith.mulf %85, %94 : vector<2x32xf32>
    %96 = arith.mulf %79, %87 : vector<2x32xf32>
    %97 = arith.addf %95, %96 : vector<2x32xf32>
    %98 = math.tanh %97 : vector<2x32xf32>
    %99 = arith.mulf %93, %98 : vector<2x32xf32>
    %cst_54 = arith.constant 0.000000e+00 : f32
    %100 = vector.broadcast %cst_54 : f32 to vector<2x1xf32>
    %101 = arith.cmpf ogt, %64, %100 : vector<2x1xf32>
    %c0_55 = arith.constant 0 : index
    %c0_56 = arith.constant 0 : index
    %102 = vector.load %arg16[%c0_55, %c0_56] : memref<2x32xf32, #tpu.memory_space<vmem>>, vector<2x32xf32>
    %103 = vector.shape_cast %101 : vector<2x1xi1> to vector<2x1xi1>
    %104 = vector.broadcast %103 : vector<2x1xi1> to vector<2x32xi1>
    %105 = arith.select %104, %97, %102 : vector<2x32xi1>, vector<2x32xf32>
    %c0_57 = arith.constant 0 : index
    %c0_58 = arith.constant 0 : index
    %106 = vector.load %arg16[%c0_57, %c0_58] : memref<2x32xf32, #tpu.memory_space<vmem>>, vector<2x32xf32>
    tpu.vector_store %arg16[%c0_57, %c0_58], %105 {strides = array<i32>} : memref<2x32xf32, #tpu.memory_space<vmem>>, vector<2x32xf32>,
    %c0_59 = arith.constant 0 : index
    %c0_60 = arith.constant 0 : index
    %107 = vector.load %arg15[%c0_59, %c0_60] : memref<2x32xf32, #tpu.memory_space<vmem>>, vector<2x32xf32>
    %108 = vector.shape_cast %101 : vector<2x1xi1> to vector<2x1xi1>
    %109 = vector.broadcast %108 : vector<2x1xi1> to vector<2x32xi1>
    %110 = arith.select %109, %99, %107 : vector<2x32xi1>, vector<2x32xf32>
    %c0_61 = arith.constant 0 : index
    %c0_62 = arith.constant 0 : index
    %111 = vector.load %arg15[%c0_61, %c0_62] : memref<2x32xf32, #tpu.memory_space<vmem>>, vector<2x32xf32>
    tpu.vector_store %arg15[%c0_61, %c0_62], %110 {strides = array<i32>} : memref<2x32xf32, #tpu.memory_space<vmem>>, vector<2x32xf32>,
    %cst_63 = arith.constant 0.000000e+00 : f32
    %112 = vector.broadcast %cst_63 : f32 to vector<2x32xf32>
    %113 = vector.shape_cast %101 : vector<2x1xi1> to vector<2x1xi1>
    %114 = vector.broadcast %113 : vector<2x1xi1> to vector<2x32xi1>
    %115 = arith.select %114, %99, %112 : vector<2x32xi1>, vector<2x32xf32>
    %c0_64 = arith.constant 0 : index
    %c0_65 = arith.constant 0 : index
    %c0_66 = arith.constant 0 : index
    %116 = vector.load %arg12[%c0_64, %c0_65, %c0_66] : memref<1x2x32xf32, #tpu.memory_space<vmem>>, vector<1x2x32xf32>
    %117 = vector.shape_cast %116 : vector<1x2x32xf32> to vector<2x32xf32>
    %118 = vector.shape_cast %115 : vector<2x32xf32> to vector<1x2x32xf32>
    tpu.vector_store %arg12[%c0_64, %c0_65, %c0_66], %118 {strides = array<i32>} : memref<1x2x32xf32, #tpu.memory_space<vmem>>, vector<1x2x32xf32>,
    return
  }
  func.func @transform_0(%arg0: i32) -> (i32, i32, i32) {
    %c0_i32 = arith.constant 0 : i32
    %c0_i32_0 = arith.constant 0 : i32
    %c0_i32_1 = arith.constant 0 : i32
    return %arg0, %c0_i32, %c0_i32_0 : i32, i32, i32
  }
  func.func @transform_1(%arg0: i32) -> (i32, i32, i32) {
    %c15_i32 = arith.constant 15 : i32
    %0 = arith.subi %c15_i32, %arg0 : i32
    %c0_i32 = arith.constant 0 : i32
    %c0_i32_0 = arith.constant 0 : i32
    %c0_i32_1 = arith.constant 0 : i32
    return %0, %c0_i32, %c0_i32_0 : i32, i32, i32
  }
  func.func @transform_2(%arg0: i32) -> (i32, i32, i32) {
    %c0_i32 = arith.constant 0 : i32
    %c0_i32_0 = arith.constant 0 : i32
    %c0_i32_1 = arith.constant 0 : i32
    return %arg0, %c0_i32, %c0_i32_0 : i32, i32, i32
  }
  func.func @transform_3(%arg0: i32) -> (i32, i32, i32) {
    %c15_i32 = arith.constant 15 : i32
    %0 = arith.subi %c15_i32, %arg0 : i32
    %c0_i32 = arith.constant 0 : i32
    %c0_i32_0 = arith.constant 0 : i32
    %c0_i32_1 = arith.constant 0 : i32
    return %0, %c0_i32, %c0_i32_0 : i32, i32, i32
  }
  func.func @transform_4(%arg0: i32) -> (i32, i32) {
    %c0_i32 = arith.constant 0 : i32
    %c0_i32_0 = arith.constant 0 : i32
    %c0_i32_1 = arith.constant 0 : i32
    return %c0_i32, %c0_i32_0 : i32, i32
  }
  func.func @transform_5(%arg0: i32) -> (i32, i32) {
    %c0_i32 = arith.constant 0 : i32
    %c0_i32_0 = arith.constant 0 : i32
    %c0_i32_1 = arith.constant 0 : i32
    return %c0_i32, %c0_i32_0 : i32, i32
  }
  func.func @transform_6(%arg0: i32) -> (i32, i32) {
    %c0_i32 = arith.constant 0 : i32
    %c0_i32_0 = arith.constant 0 : i32
    %c0_i32_1 = arith.constant 0 : i32
    return %c0_i32, %c0_i32_0 : i32, i32
  }
  func.func @transform_7(%arg0: i32) -> (i32, i32) {
    %c0_i32 = arith.constant 0 : i32
    %c0_i32_0 = arith.constant 0 : i32
    %c0_i32_1 = arith.constant 0 : i32
    return %c0_i32, %c0_i32_0 : i32, i32
  }
  func.func @transform_8(%arg0: i32) -> (i32, i32) {
    %c0_i32 = arith.constant 0 : i32
    %c0_i32_0 = arith.constant 0 : i32
    %c0_i32_1 = arith.constant 0 : i32
    return %c0_i32, %c0_i32_0 : i32, i32
  }
  func.func @transform_9(%arg0: i32) -> (i32, i32) {
    %c0_i32 = arith.constant 0 : i32
    %c0_i32_0 = arith.constant 0 : i32
    %c0_i32_1 = arith.constant 0 : i32
    return %c0_i32, %c0_i32_0 : i32, i32
  }
  func.func @transform_10(%arg0: i32) -> (i32, i32, i32) {
    %c0_i32 = arith.constant 0 : i32
    %c0_i32_0 = arith.constant 0 : i32
    %c0_i32_1 = arith.constant 0 : i32
    return %arg0, %c0_i32, %c0_i32_0 : i32, i32, i32
  }
  func.func @transform_11(%arg0: i32) -> (i32, i32, i32) {
    %c15_i32 = arith.constant 15 : i32
    %0 = arith.subi %c15_i32, %arg0 : i32
    %c0_i32 = arith.constant 0 : i32
    %c0_i32_0 = arith.constant 0 : i32
    %c0_i32_1 = arith.constant 0 : i32
    return %0, %c0_i32, %c0_i32_0 : i32, i32, i32
  }
}

</mosaic_0001>

<llo_original>
// kernel: tpu_custom_call.1
$region0: #{tpu_custom_call.1}
  #allocation0 [shape = 'u32[]', space=smem, size = 0x4, offset = 0x4, fixed_abs, tag = 'smem constant byte address 0x4 - core index']
  #allocation1 [shape = 'u32[72,128]{1,0:T(1,128)}', space=vmem, size = 0x9000, scoped, tag = 'internal scratch']
  #allocation2 [shape = 'f32[2,32]{1,0:T(2,128)}', space=vmem, size = 0x400, scoped, tag = 'scratch operand']
  #allocation3 [shape = 'f32[2,32]{1,0:T(2,128)}', space=vmem, size = 0x400, scoped, tag = 'scratch operand']
  #allocation4 [shape = 'f32[2,32]{1,0:T(2,128)}', space=vmem, size = 0x400, scoped, tag = 'scratch operand']
  #allocation5 [shape = 'f32[2,32]{1,0:T(2,128)}', space=vmem, size = 0x400, scoped, tag = 'scratch operand']
  %s0 = inlined_call_operand.hbm [shape: f32[16,2,64], index: 0, kind: input, shape index: {}]
  %s1 = inlined_call_operand.hbm [shape: f32[16,2,64], index: 1, kind: input, shape index: {}]
  %s2 = inlined_call_operand.vmem [shape: f32[16,2,1], index: 2, kind: input, shape index: {}]
  %s3 = inlined_call_operand.vmem [shape: f32[16,2,1], index: 3, kind: input, shape index: {}]
  %s4 = inlined_call_operand.vmem [shape: f32[64,128], index: 4, kind: input, shape index: {}]
  %s5 = inlined_call_operand.hbm [shape: f32[32,128], index: 5, kind: input, shape index: {}]
  %s6 = inlined_call_operand.vmem [shape: f32[1,128], index: 6, kind: input, shape index: {}]
  %s7 = inlined_call_operand.hbm [shape: f32[64,128], index: 7, kind: input, shape index: {}]
  %s8 = inlined_call_operand.hbm [shape: f32[32,128], index: 8, kind: input, shape index: {}]
  %s9 = inlined_call_operand.vmem [shape: f32[1,128], index: 9, kind: input, shape index: {}]
  %s10 = inlined_call_operand.hbm [shape: f32[16,2,32], index: 10, kind: output, shape index: {0}]
  %s11 = inlined_call_operand.hbm [shape: f32[16,2,32], index: 11, kind: output, shape index: {1}]
  %12 = xla_tuple %s10, %s11
  %s13 = sld [smem:[#allocation0]]
  $region105: #{tpu_custom_call.1} parent=0
    _
  %s15 = ssub.s32 1, %s13
  %s16 = scalar_select 0, %s15, %s13
  $region1: #{tpu_custom_call.1} parent=0
    #allocation6 [shape = 'u8[2048]{0}', space=vmem, size = 0x800, scoped, tag = 'input window, operand 0']
    #allocation7 [shape = 's32[2]{0}', space=sflag, size = 0x8, scoped, tag = 'scoped memory for tpu_custom_call.1']
    #allocation8 [shape = 's32[2]{0}', space=sflag, size = 0x8, scoped, tag = 'scoped memory for tpu_custom_call.1']
    #allocation9 [shape = 'u8[2048]{0}', space=vmem, size = 0x800, scoped, tag = 'input window, operand 1']
    #allocation10 [shape = 's32[2]{0}', space=sflag, size = 0x8, scoped, tag = 'scoped memory for tpu_custom_call.1']
    #allocation11 [shape = 'u8[16384]{0}', space=vmem, size = 0x4000, scoped, tag = 'input window, operand 5, single buffered']
    #allocation12 [shape = 'u8[32768]{0}', space=vmem, size = 0x8000, scoped, tag = 'input window, operand 7, single buffered']
    #allocation13 [shape = 's32[1]{0}', space=sflag, size = 0x4, scoped, tag = 'scoped memory for tpu_custom_call.1']
    #allocation14 [shape = 'u8[16384]{0}', space=vmem, size = 0x4000, scoped, tag = 'input window, operand 8, single buffered']
    #allocation15 [shape = 'u8[2048]{0}', space=vmem, size = 0x800, scoped, tag = 'output window, operand 0']
    #allocation16 [shape = 'u8[2048]{0}', space=vmem, size = 0x800, scoped, tag = 'output window, operand 1']
    #allocation17 [shape = 's32[2]{0}', space=sflag, size = 0x8, scoped, tag = 'scoped memory for tpu_custom_call.1']
    %17 = vsyncpa [#allocation7], 0
    %s18 = scalar_lea.sflag [#allocation7], 1
    %19 = vsyncpa %s18, 0
    %20 = vsyncpa [#allocation10], 0
    %s21 = scalar_lea.sflag [#allocation10], 1
    %22 = vsyncpa %s21, 0
    %23 = vsyncpa [#allocation13], 0
    %24 = vsyncpa [#allocation8], 0
    %s25 = scalar_lea.sflag [#allocation8], 1
    %26 = vsyncpa %s25, 0
    %27 = vsyncpa [#allocation17], 0
    %s28 = scalar_lea.sflag [#allocation17], 1
    %29 = vsyncpa %s28, 0
    loop: start=0, step=1, limit=18
    $region2: #{tpu_custom_call.1} parent=1 // loop_pre_header
      _
    $region3: #{tpu_custom_call.1} parent=1 // loop_header
      %s31 = sphi 0, %s35
      %p32 = scmp.ge.s32.totalorder %s31, 18
      %s41 = sphi 0, %s43
      %s44 = sphi 0, %s41
      %s45 = sphi 0, %s44
      %s61 = sphi 0, %s45
      %s69 = sphi 0, %s71
      %s72 = sphi 0, %s69
      %s73 = sphi 0, %s72
      %s89 = sphi 0, %s73
      %s95 = sphi 0, %s97
      %s98 = sphi 0, %s95
      %s99 = sphi 0, %s98
      %s115 = sphi 0, %s99
      %s123 = sphi 0, %s125
      %s126 = sphi 0, %s123
      %s127 = sphi 0, %s126
      %s143 = sphi 0, %s127
      %s147 = sphi 0, %s147
      %s149 = sphi 0, %s147
      %s150 = sphi 0, %s149
      %s164 = sphi 0, %s150
      %s168 = sphi 0, %s168
      %s170 = sphi 0, %s168
      %s171 = sphi 0, %s170
      %s185 = sphi 0, %s171
      %s189 = sphi 0, %s189
      %s191 = sphi 0, %s189
      %s192 = sphi 0, %s191
      %s206 = sphi 0, %s192
      %s210 = sphi 0, %s210
      %s212 = sphi 0, %s210
      %s213 = sphi 0, %s212
      %s227 = sphi 0, %s213
      %s231 = sphi 0, %s231
      %s233 = sphi 0, %s231
      %s234 = sphi 0, %s233
      %s248 = sphi 0, %s234
      %s252 = sphi 0, %s252
      %s254 = sphi 0, %s252
      %s255 = sphi 0, %s254
      %s269 = sphi 0, %s255
      %s275 = sphi 0, %s277
      %s278 = sphi 0, %s275
      %s279 = sphi 0, %s278
      %s295 = sphi 0, %s279
      %s303 = sphi 0, %s305
      %s306 = sphi 0, %s303
      %s307 = sphi 0, %s306
      %s323 = sphi 0, %s307
    $region4: #{tpu_custom_call.1} parent=1 // loop_header_branch
      %34 = sbr.rel (%p32) target = $region8
    $region5: #{tpu_custom_call.1} parent=1 // loop_body
      %s36 = ssub.s32 %s31, 1
      %s37 = ssub.s32 %s31, 2
      %s38 = sadd.s32 %s31, 1
      %s39 = ssub.s32 %s31, %s38
      %p40 = scmp.eq.s32.totalorder %s39, 0
      %s42 = sadd.s32 %s41, 1
      %s43 = scalar_select %p40, %s41, %s42
      %p46 = pneg %p40
      %p47 = scmp.eq.s32.totalorder %s31, 15
      %p48 = por %p46, %p47
      %p49 = scmp.ne.s32.totalorder %s41, %s44
      %p50 = scmp.eq.s32.totalorder %s31, 0
      %p51 = por %p49, %p50
      %p52 = scmp.ne.s32.totalorder %s41, %s44
      %p53 = scmp.eq.s32.totalorder %s36, 15
      %p54 = por %p52, %p53
      %p55 = scmp.ne.s32.totalorder %s44, %s45
      %p56 = scmp.eq.s32.totalorder %s36, 0
      %p57 = por %p55, %p56
      %p58 = scmp.ne.s32.totalorder %s44, %s45
      %p59 = scmp.eq.s32.totalorder %s37, 15
      %p60 = por %p58, %p59
      %p62 = scmp.ne.s32.totalorder %s45, %s61
      %p63 = scmp.eq.s32.totalorder %s37, 0
      %p64 = por %p62, %p63
      %s65 = ssub.s32 15, %s31
      %s66 = ssub.s32 15, %s38
      %s67 = ssub.s32 %s65, %s66
      %p68 = scmp.eq.s32.totalorder %s67, 0
      %s70 = sadd.s32 %s69, 1
      %s71 = scalar_select %p68, %s69, %s70
      %p74 = pneg %p68
      %p75 = scmp.eq.s32.totalorder %s31, 15
      %p76 = por %p74, %p75
      %p77 = scmp.ne.s32.totalorder %s69, %s72
      %p78 = scmp.eq.s32.totalorder %s31, 0
      %p79 = por %p77, %p78
      %p80 = scmp.ne.s32.totalorder %s69, %s72
      %p81 = scmp.eq.s32.totalorder %s36, 15
      %p82 = por %p80, %p81
      %p83 = scmp.ne.s32.totalorder %s72, %s73
      %p84 = scmp.eq.s32.totalorder %s36, 0
      %p85 = por %p83, %p84
      %p86 = scmp.ne.s32.totalorder %s72, %s73
      %p87 = scmp.eq.s32.totalorder %s37, 15
      %p88 = por %p86, %p87
      %p90 = scmp.ne.s32.totalorder %s73, %s89
      %p91 = scmp.eq.s32.totalorder %s37, 0
      %p92 = por %p90, %p91
      %s93 = ssub.s32 %s31, %s38
      %p94 = scmp.eq.s32.totalorder %s93, 0
      %s96 = sadd.s32 %s95, 1
      %s97 = scalar_select %p94, %s95, %s96
      %p100 = pneg %p94
      %p101 = scmp.eq.s32.totalorder %s31, 15
      %p102 = por %p100, %p101
      %p103 = scmp.ne.s32.totalorder %s95, %s98
      %p104 = scmp.eq.s32.totalorder %s31, 0
      %p105 = por %p103, %p104
      %p106 = scmp.ne.s32.totalorder %s95, %s98
      %p107 = scmp.eq.s32.totalorder %s36, 15
      %p108 = por %p106, %p107
      %p109 = scmp.ne.s32.totalorder %s98, %s99
      %p110 = scmp.eq.s32.totalorder %s36, 0
      %p111 = por %p109, %p110
      %p112 = scmp.ne.s32.totalorder %s98, %s99
      %p113 = scmp.eq.s32.totalorder %s37, 15
      %p114 = por %p112, %p113
      %p116 = scmp.ne.s32.totalorder %s99, %s115
      %p117 = scmp.eq.s32.totalorder %s37, 0
      %p118 = por %p116, %p117
      %s119 = ssub.s32 15, %s31
      %s120 = ssub.s32 15, %s38
      %s121 = ssub.s32 %s119, %s120
      %p122 = scmp.eq.s32.totalorder %s121, 0
      %s124 = sadd.s32 %s123, 1
      %s125 = scalar_select %p122, %s123, %s124
      %p128 = pneg %p122
      %p129 = scmp.eq.s32.totalorder %s31, 15
      %p130 = por %p128, %p129
      %p131 = scmp.ne.s32.totalorder %s123, %s126
      %p132 = scmp.eq.s32.totalorder %s31, 0
      %p133 = por %p131, %p132
      %p134 = scmp.ne.s32.totalorder %s123, %s126
      %p135 = scmp.eq.s32.totalorder %s36, 15
      %p136 = por %p134, %p135
      %p137 = scmp.ne.s32.totalorder %s126, %s127
      %p138 = scmp.eq.s32.totalorder %s36, 0
      %p139 = por %p137, %p138
      %p140 = scmp.ne.s32.totalorder %s126, %s127
      %p141 = scmp.eq.s32.totalorder %s37, 15
      %p142 = por %p140, %p141
      %p144 = scmp.ne.s32.totalorder %s127, %s143
      %p145 = scmp.eq.s32.totalorder %s37, 0
      %p146 = por %p144, %p145
      %s148 = sadd.s32 %s147, 1
      %p151 = scmp.eq.s32.totalorder %s31, 15
      %p152 = scmp.ne.s32.totalorder %s147, %s149
      %p153 = scmp.eq.s32.totalorder %s31, 0
      %p154 = por %p152, %p153
      %p155 = scmp.ne.s32.totalorder %s147, %s149
      %p156 = scmp.eq.s32.totalorder %s36, 15
      %p157 = por %p155, %p156
      %p158 = scmp.ne.s32.totalorder %s149, %s150
      %p159 = scmp.eq.s32.totalorder %s36, 0
      %p160 = por %p158, %p159
      %p161 = scmp.ne.s32.totalorder %s149, %s150
      %p162 = scmp.eq.s32.totalorder %s37, 15
      %p163 = por %p161, %p162
      %p165 = scmp.ne.s32.totalorder %s150, %s164
      %p166 = scmp.eq.s32.totalorder %s37, 0
      %p167 = por %p165, %p166
      %s169 = sadd.s32 %s168, 1
      %p172 = scmp.eq.s32.totalorder %s31, 15
      %p173 = scmp.ne.s32.totalorder %s168, %s170
      %p174 = scmp.eq.s32.totalorder %s31, 0
      %p175 = por %p173, %p174
      %p176 = scmp.ne.s32.totalorder %s168, %s170
      %p177 = scmp.eq.s32.totalorder %s36, 15
      %p178 = por %p176, %p177
      %p179 = scmp.ne.s32.totalorder %s170, %s171
      %p180 = scmp.eq.s32.totalorder %s36, 0
      %p181 = por %p179, %p180
      %p182 = scmp.ne.s32.totalorder %s170, %s171
      %p183 = scmp.eq.s32.totalorder %s37, 15
      %p184 = por %p182, %p183
      %p186 = scmp.ne.s32.totalorder %s171, %s185
      %p187 = scmp.eq.s32.totalorder %s37, 0
      %p188 = por %p186, %p187
      %s190 = sadd.s32 %s189, 1
      %p193 = scmp.eq.s32.totalorder %s31, 15
      %p194 = scmp.ne.s32.totalorder %s189, %s191
      %p195 = scmp.eq.s32.totalorder %s31, 0
      %p196 = por %p194, %p195
      %p197 = scmp.ne.s32.totalorder %s189, %s191
      %p198 = scmp.eq.s32.totalorder %s36, 15
      %p199 = por %p197, %p198
      %p200 = scmp.ne.s32.totalorder %s191, %s192
      %p201 = scmp.eq.s32.totalorder %s36, 0
      %p202 = por %p200, %p201
      %p203 = scmp.ne.s32.totalorder %s191, %s192
      %p204 = scmp.eq.s32.totalorder %s37, 15
      %p205 = por %p203, %p204
      %p207 = scmp.ne.s32.totalorder %s192, %s206
      %p208 = scmp.eq.s32.totalorder %s37, 0
      %p209 = por %p207, %p208
      %s211 = sadd.s32 %s210, 1
      %p214 = scmp.eq.s32.totalorder %s31, 15
      %p215 = scmp.ne.s32.totalorder %s210, %s212
      %p216 = scmp.eq.s32.totalorder %s31, 0
      %p217 = por %p215, %p216
      %p218 = scmp.ne.s32.totalorder %s210, %s212
      %p219 = scmp.eq.s32.totalorder %s36, 15
      %p220 = por %p218, %p219
      %p221 = scmp.ne.s32.totalorder %s212, %s213
      %p222 = scmp.eq.s32.totalorder %s36, 0
      %p223 = por %p221, %p222
      %p224 = scmp.ne.s32.totalorder %s212, %s213
      %p225 = scmp.eq.s32.totalorder %s37, 15
      %p226 = por %p224, %p225
      %p228 = scmp.ne.s32.totalorder %s213, %s227
      %p229 = scmp.eq.s32.totalorder %s37, 0
      %p230 = por %p228, %p229
      %s232 = sadd.s32 %s231, 1
      %p235 = scmp.eq.s32.totalorder %s31, 15
      %p236 = scmp.ne.s32.totalorder %s231, %s233
      %p237 = scmp.eq.s32.totalorder %s31, 0
      %p238 = por %p236, %p237
      %p239 = scmp.ne.s32.totalorder %s231, %s233
      %p240 = scmp.eq.s32.totalorder %s36, 15
      %p241 = por %p239, %p240
      %p242 = scmp.ne.s32.totalorder %s233, %s234
      %p243 = scmp.eq.s32.totalorder %s36, 0
      %p244 = por %p242, %p243
      %p245 = scmp.ne.s32.totalorder %s233, %s234
      %p246 = scmp.eq.s32.totalorder %s37, 15
      %p247 = por %p245, %p246
      %p249 = scmp.ne.s32.totalorder %s234, %s248
      %p250 = scmp.eq.s32.totalorder %s37, 0
      %p251 = por %p249, %p250
      %s253 = sadd.s32 %s252, 1
      %p256 = scmp.eq.s32.totalorder %s31, 15
      %p257 = scmp.ne.s32.totalorder %s252, %s254
      %p258 = scmp.eq.s32.totalorder %s31, 0
      %p259 = por %p257, %p258
      %p260 = scmp.ne.s32.totalorder %s252, %s254
      %p261 = scmp.eq.s32.totalorder %s36, 15
      %p262 = por %p260, %p261
      %p263 = scmp.ne.s32.totalorder %s254, %s255
      %p264 = scmp.eq.s32.totalorder %s36, 0
      %p265 = por %p263, %p264
      %p266 = scmp.ne.s32.totalorder %s254, %s255
      %p267 = scmp.eq.s32.totalorder %s37, 15
      %p268 = por %p266, %p267
      %p270 = scmp.ne.s32.totalorder %s255, %s269
      %p271 = scmp.eq.s32.totalorder %s37, 0
      %p272 = por %p270, %p271
      %s273 = ssub.s32 %s31, %s38
      %p274 = scmp.eq.s32.totalorder %s273, 0
      %s276 = sadd.s32 %s275, 1
      %s277 = scalar_select %p274, %s275, %s276
      %p280 = pneg %p274
      %p281 = scmp.eq.s32.totalorder %s31, 15
      %p282 = por %p280, %p281
      %p283 = scmp.ne.s32.totalorder %s275, %s278
      %p284 = scmp.eq.s32.totalorder %s31, 0
      %p285 = por %p283, %p284
      %p286 = scmp.ne.s32.totalorder %s275, %s278
      %p287 = scmp.eq.s32.totalorder %s36, 15
      %p288 = por %p286, %p287
      %p289 = scmp.ne.s32.totalorder %s278, %s279
      %p290 = scmp.eq.s32.totalorder %s36, 0
      %p291 = por %p289, %p290
      %p292 = scmp.ne.s32.totalorder %s278, %s279
      %p293 = scmp.eq.s32.totalorder %s37, 15
      %p294 = por %p292, %p293
      %p296 = scmp.ne.s32.totalorder %s279, %s295
      %p297 = scmp.eq.s32.totalorder %s37, 0
      %p298 = por %p296, %p297
      %s299 = ssub.s32 15, %s31
      %s300 = ssub.s32 15, %s38
      %s301 = ssub.s32 %s299, %s300
      %p302 = scmp.eq.s32.totalorder %s301, 0
      %s304 = sadd.s32 %s303, 1
      %s305 = scalar_select %p302, %s303, %s304
      %p308 = pneg %p302
      %p309 = scmp.eq.s32.totalorder %s31, 15
      %p310 = por %p308, %p309
      %p311 = scmp.ne.s32.totalorder %s303, %s306
      %p312 = scmp.eq.s32.totalorder %s31, 0
      %p313 = por %p311, %p312
      %p314 = scmp.ne.s32.totalorder %s303, %s306
      %p315 = scmp.eq.s32.totalorder %s36, 15
      %p316 = por %p314, %p315
      %p317 = scmp.ne.s32.totalorder %s306, %s307
      %p318 = scmp.eq.s32.totalorder %s36, 0
      %p319 = por %p317, %p318
      %p320 = scmp.ne.s32.totalorder %s306, %s307
      %p321 = scmp.eq.s32.totalorder %s37, 15
      %p322 = por %p320, %p321
      %p324 = scmp.ne.s32.totalorder %s307, %s323
      %p325 = scmp.eq.s32.totalorder %s37, 0
      %p326 = por %p324, %p325
      %p327 = scmp.le.s32.totalorder 1, %s31
      %p328 = scmp.lt.s32.totalorder %s31, 17
      %p329 = pnand %p327, %p328
      %p330 = pneg %p329
      // Predicated region
      $region9: #{tpu_custom_call.1} parent=5 // pred_check
        _
      $region10: #{tpu_custom_call.1} parent=5 // pred_check_branch
        %332 = sbr.rel (%p329) target = $region12
      $region11: #{tpu_custom_call.1} parent=5 // pred_region
        %s333 = ssub.s32 %s31, 1
        // Predicated region
        $region13: #{tpu_custom_call.1} parent=11 // pred_check
          %p334 = pneg %p160
        $region14: #{tpu_custom_call.1} parent=11 // pred_check_branch
          %336 = sbr.rel (%p334) target = $region16
        $region15: #{tpu_custom_call.1} parent=11 // pred_region
          _
        $region16: #{tpu_custom_call.1} parent=11 // pred_fallthru
          _
        // Predicated region
        $region17: #{tpu_custom_call.1} parent=11 // pred_check
          %p337 = pneg %p181
        $region18: #{tpu_custom_call.1} parent=11 // pred_check_branch
          %339 = sbr.rel (%p337) target = $region20
        $region19: #{tpu_custom_call.1} parent=11 // pred_region
          %341 = vsyncadd [#allocation10], 0
          %s342 = sshll.u32 %s5, 4
          %s343 = int_to_ptr.hbm [resolvable:$true] %s342
          %s344 = sshll.u32 [#allocation11], 4
          %s345 = int_to_ptr.vmem [resolvable:$true] %s344
          %350 = dma.hbm_to_vmem [thread:$0]  %s343, 512, %s345, [#allocation10], 128, 128, 8
        $region20: #{tpu_custom_call.1} parent=11 // pred_fallthru
          _
        // Predicated region
        $region21: #{tpu_custom_call.1} parent=11 // pred_check
          %p351 = pneg %p202
        $region22: #{tpu_custom_call.1} parent=11 // pred_check_branch
          %353 = sbr.rel (%p351) target = $region24
        $region23: #{tpu_custom_call.1} parent=11 // pred_region
          _
        $region24: #{tpu_custom_call.1} parent=11 // pred_fallthru
          _
        // Predicated region
        $region25: #{tpu_custom_call.1} parent=11 // pred_check
          %p354 = pneg %p223
        $region26: #{tpu_custom_call.1} parent=11 // pred_check_branch
          %356 = sbr.rel (%p354) target = $region28
        $region27: #{tpu_custom_call.1} parent=11 // pred_region
          %358 = vsyncadd [#allocation13], 0
          %s359 = sshll.u32 %s7, 4
          %s360 = int_to_ptr.hbm [resolvable:$true] %s359
          %s361 = sshll.u32 [#allocation12], 4
          %s362 = int_to_ptr.vmem [resolvable:$true] %s361
          %367 = dma.hbm_to_vmem [thread:$0]  %s360, 1024, %s362, [#allocation13], 128, 128, 8
        $region28: #{tpu_custom_call.1} parent=11 // pred_fallthru
          _
        // Predicated region
        $region29: #{tpu_custom_call.1} parent=11 // pred_check
          %p368 = pneg %p244
        $region30: #{tpu_custom_call.1} parent=11 // pred_check_branch
          %370 = sbr.rel (%p368) target = $region32
        $region31: #{tpu_custom_call.1} parent=11 // pred_region
          %372 = vsyncadd [#allocation13], 0
          %s373 = sshll.u32 %s8, 4
          %s374 = int_to_ptr.hbm [resolvable:$true] %s373
          %s375 = sshll.u32 [#allocation14], 4
          %s376 = int_to_ptr.vmem [resolvable:$true] %s375
          %381 = dma.hbm_to_vmem [thread:$0]  %s374, 512, %s376, [#allocation13], 128, 128, 8
        $region32: #{tpu_custom_call.1} parent=11 // pred_fallthru
          _
        // Predicated region
        $region33: #{tpu_custom_call.1} parent=11 // pred_check
          %p382 = pneg %p265
        $region34: #{tpu_custom_call.1} parent=11 // pred_check_branch
          %384 = sbr.rel (%p382) target = $region36
        $region35: #{tpu_custom_call.1} parent=11 // pred_region
          _
        $region36: #{tpu_custom_call.1} parent=11 // pred_fallthru
          _
      $region12: #{tpu_custom_call.1} parent=5 // pred_fallthru
        _
      %p385 = scmp.lt.s32.totalorder %s31, 16
      // Predicated region
      $region37: #{tpu_custom_call.1} parent=5 // pred_check
        %p386 = pneg %p385
      $region38: #{tpu_custom_call.1} parent=5 // pred_check_branch
        %388 = sbr.rel (%p386) target = $region40
      $region39: #{tpu_custom_call.1} parent=5 // pred_region
        // Predicated region
        $region41: #{tpu_custom_call.1} parent=39 // pred_check
          %p389 = pneg %p51
        $region42: #{tpu_custom_call.1} parent=39 // pred_check_branch
          %391 = sbr.rel (%p389) target = $region44
        $region43: #{tpu_custom_call.1} parent=39 // pred_region
          %s392 = sand.u32 %s41, 1
          %s393 = scalar_lea.sflag [#allocation7], %s392
          %s394 = sand.u32 %s41, 1
          %s395 = smul.addr %s394, 2
          %s396 = scalar_lea.vmem [#allocation6], %s395
          %398 = vsyncadd %s393, 0
          %s399 = smul.addr %s31, 2
          %s400 = scalar_lea.hbm %s0, %s399
          %s402 = sshll.u32 %s400, 4
          %s403 = int_to_ptr.hbm [resolvable:$true] %s402
          %s404 = sshll.u32 %s396, 4
          %s405 = int_to_ptr.vmem [resolvable:$true] %s404
          %407 = dma.hbm_to_vmem [thread:$0]  %s403, 32, %s405, %s393
        $region44: #{tpu_custom_call.1} parent=39 // pred_fallthru
          _
        // Predicated region
        $region45: #{tpu_custom_call.1} parent=39 // pred_check
          %p408 = pneg %p79
        $region46: #{tpu_custom_call.1} parent=39 // pred_check_branch
          %410 = sbr.rel (%p408) target = $region48
        $region47: #{tpu_custom_call.1} parent=39 // pred_region
          %s411 = sand.u32 %s31, 1
          %s412 = scalar_lea.sflag [#allocation10], %s411
          %s413 = sand.u32 %s69, 1
          %s414 = smul.addr %s413, 2
          %s415 = scalar_lea.vmem [#allocation9], %s414
          %s416 = ssub.s32 15, %s31
          %418 = vsyncadd %s412, 0
          %s419 = smul.addr %s416, 2
          %s420 = scalar_lea.hbm %s1, %s419
          %s422 = sshll.u32 %s420, 4
          %s423 = int_to_ptr.hbm [resolvable:$true] %s422
          %s424 = sshll.u32 %s415, 4
          %s425 = int_to_ptr.vmem [resolvable:$true] %s424
          %427 = dma.hbm_to_vmem [thread:$0]  %s423, 32, %s425, %s412
        $region48: #{tpu_custom_call.1} parent=39 // pred_fallthru
          _
        // Predicated region
        $region49: #{tpu_custom_call.1} parent=39 // pred_check
          %p428 = pneg %p105
        $region50: #{tpu_custom_call.1} parent=39 // pred_check_branch
          %430 = sbr.rel (%p428) target = $region52
        $region51: #{tpu_custom_call.1} parent=39 // pred_region
          %p431 = scmp.lt.s32.totalorder %s31, 15
          %s432 = scalar_select %p431, %s31, 15
          %s433 = smul.addr %s432, 2
          %s434 = scalar_lea.vmem %s2, %s433
        $region52: #{tpu_custom_call.1} parent=39 // pred_fallthru
          _
        // Predicated region
        $region53: #{tpu_custom_call.1} parent=39 // pred_check
          %p435 = pneg %p133
        $region54: #{tpu_custom_call.1} parent=39 // pred_check_branch
          %437 = sbr.rel (%p435) target = $region56
        $region55: #{tpu_custom_call.1} parent=39 // pred_region
          %s438 = ssub.s32 15, %s31
          %p439 = scmp.lt.s32.totalorder %s438, 15
          %s440 = scalar_select %p439, %s438, 15
          %s441 = smul.addr %s440, 2
          %s442 = scalar_lea.vmem %s3, %s441
          %s443 = ssub.s32 15, %s31
        $region56: #{tpu_custom_call.1} parent=39 // pred_fallthru
          _
      $region40: #{tpu_custom_call.1} parent=5 // pred_fallthru
        _
      %p444 = scmp.le.s32.totalorder 1, %s31
      %p445 = scmp.lt.s32.totalorder %s31, 17
      %p446 = pnand %p444, %p445
      %p447 = pneg %p446
      // Predicated region
      $region57: #{tpu_custom_call.1} parent=5 // pred_check
        _
      $region58: #{tpu_custom_call.1} parent=5 // pred_check_branch
        %449 = sbr.rel (%p446) target = $region60
      $region59: #{tpu_custom_call.1} parent=5 // pred_region
        %s450 = ssub.s32 %s31, 1
        %s451 = sand.u32 %s44, 1
        %s452 = scalar_lea.sflag [#allocation7], %s451
        %s453 = sand.u32 %s44, 1
        %s454 = smul.addr %s453, 2
        %s455 = scalar_lea.vmem [#allocation6], %s454
        // Predicated region
        $region61: #{tpu_custom_call.1} parent=59 // pred_check
          %p456 = pneg %p57
        $region62: #{tpu_custom_call.1} parent=59 // pred_check_branch
          %458 = sbr.rel (%p456) target = $region64
        $region63: #{tpu_custom_call.1} parent=59 // pred_region
          %460 = dma.done %s452, 32
        $region64: #{tpu_custom_call.1} parent=59 // pred_fallthru
          _
        %s461 = sand.u32 %s36, 1
        %s462 = scalar_lea.sflag [#allocation10], %s461
        %s463 = sand.u32 %s72, 1
        %s464 = smul.addr %s463, 2
        %s465 = scalar_lea.vmem [#allocation9], %s464
        // Predicated region
        $region65: #{tpu_custom_call.1} parent=59 // pred_check
          %p466 = pneg %p85
        $region66: #{tpu_custom_call.1} parent=59 // pred_check_branch
          %468 = sbr.rel (%p466) target = $region68
        $region67: #{tpu_custom_call.1} parent=59 // pred_region
          %470 = dma.done %s462, 32
        $region68: #{tpu_custom_call.1} parent=59 // pred_fallthru
          _
        // Predicated region
        $region69: #{tpu_custom_call.1} parent=59 // pred_check
          %p471 = pneg %p181
        $region70: #{tpu_custom_call.1} parent=59 // pred_check_branch
          %473 = sbr.rel (%p471) target = $region72
        $region71: #{tpu_custom_call.1} parent=59 // pred_region
          %475 = dma.done [#allocation10], 512
        $region72: #{tpu_custom_call.1} parent=59 // pred_fallthru
          _
        // Predicated region
        $region73: #{tpu_custom_call.1} parent=59 // pred_check
          %p476 = pneg %p223
        $region74: #{tpu_custom_call.1} parent=59 // pred_check_branch
          %478 = sbr.rel (%p476) target = $region76
        $region75: #{tpu_custom_call.1} parent=59 // pred_region
          %480 = dma.done [#allocation13], 1024
        $region76: #{tpu_custom_call.1} parent=59 // pred_fallthru
          _
        // Predicated region
        $region77: #{tpu_custom_call.1} parent=59 // pred_check
          %p481 = pneg %p244
        $region78: #{tpu_custom_call.1} parent=59 // pred_check_branch
          %483 = sbr.rel (%p481) target = $region80
        $region79: #{tpu_custom_call.1} parent=59 // pred_region
          %485 = dma.done [#allocation13], 512
        $region80: #{tpu_custom_call.1} parent=59 // pred_fallthru
          _
        %s486 = sand.u32 %s44, 1
        %s487 = scalar_lea.sflag [#allocation7], %s486
        %s488 = sand.u32 %s44, 1
        %s489 = smul.addr %s488, 2
        %s490 = scalar_lea.vmem [#allocation6], %s489
        %p491 = pneg %p57
        %p492 = pneg %p54
        %s493 = sand.u32 %s36, 1
        %s494 = scalar_lea.sflag [#allocation10], %s493
        %s495 = sand.u32 %s72, 1
        %s496 = smul.addr %s495, 2
        %s497 = scalar_lea.vmem [#allocation9], %s496
        %p498 = pneg %p85
        %p499 = pneg %p82
        %p500 = scmp.lt.s32.totalorder %s36, 15
        %s501 = scalar_select %p500, %s36, 15
        %s502 = smul.addr %s501, 2
        %s503 = scalar_lea.vmem %s2, %s502
        %p504 = pneg %p111
        %p505 = pneg %p108
        %s506 = ssub.s32 15, %s36
        %p507 = scmp.lt.s32.totalorder %s506, 15
        %s508 = scalar_select %p507, %s506, 15
        %s509 = smul.addr %s508, 2
        %s510 = scalar_lea.vmem %s3, %s509
        %p511 = pneg %p139
        %p512 = pneg %p136
        %p513 = pneg %p160
        %p514 = pneg %p157
        %p515 = pneg %p181
        %p516 = pneg %p178
        %p517 = pneg %p202
        %p518 = pneg %p199
        %p519 = pneg %p223
        %p520 = pneg %p220
        %p521 = pneg %p244
        %p522 = pneg %p241
        %p523 = pneg %p265
        %p524 = pneg %p262
        %p525 = pneg %p291
        %p526 = pneg %p288
        %s527 = sand.u32 %s278, 1
        %s528 = scalar_lea.sflag [#allocation8], %s527
        %s529 = sand.u32 %s278, 1
        %s530 = smul.addr %s529, 2
        %s531 = scalar_lea.vmem [#allocation15], %s530
        %p532 = pneg %p319
        %p533 = pneg %p316
        %s534 = sand.u32 %s306, 1
        %s535 = scalar_lea.sflag [#allocation17], %s534
        %s536 = sand.u32 %s306, 1
        %s537 = smul.addr %s536, 2
        %s538 = scalar_lea.vmem [#allocation16], %s537
        %s539 = ssub.s32 15, %s36
        %p540 = scmp.lt.s32.totalorder %s36, 15
        %s541 = scalar_select %p540, %s36, 15
        %s542 = smul.addr %s541, 2
        %s543 = scalar_lea.vmem %s2, %s542
        %s544 = ssub.s32 15, %s36
        %p545 = scmp.lt.s32.totalorder %s544, 15
        %s546 = scalar_select %p545, %s544, 15
        %s547 = smul.addr %s546, 2
        %s548 = scalar_lea.vmem %s3, %s547
        %s549 = ssub.s32 15, %s36
        %s550 = ssub.s32 15, %s36
        %p551 = scmp.eq.s32.totalorder %s36, 0
        // Predicated region
        $region81: #{tpu_custom_call.1} parent=59 // pred_check
          %p552 = pneg %p551
        $region82: #{tpu_custom_call.1} parent=59 // pred_check_branch
          %554 = sbr.rel (%p552) target = $region84
        $region83: #{tpu_custom_call.1} parent=59 // pred_region
          %vm555 = vcmask 254976
          %556 = vst.msk [vmem:[#allocation2] sm:$0x3] %vm555, 0.0
          %557 = vst.msk [vmem:[#allocation3] sm:$0x3] %vm555, 0.0
          %558 = vst.msk [vmem:[#allocation4] sm:$0x3] %vm555, 0.0
          %559 = vst.msk [vmem:[#allocation5] sm:$0x3] %vm555, 0.0
        $region84: #{tpu_custom_call.1} parent=59 // pred_fallthru
          _
        %v560 = vld [vmem:[%s455] sm:$0x3]
        %v561 = vld [vmem:[%s543] sm:$0x3]
        %v562 = vld [vmem:[%s4] sm:$0xff]
        %v563 = vld [vmem:[%s4 + $0x8] sm:$0xff]
        %v564 = vld [vmem:[%s4 + $0x10] sm:$0xff]
        %v565 = vld [vmem:[%s4 + $0x18] sm:$0xff]
        %v566 = vld [vmem:[%s4 + $0x20] sm:$0xff]
        %v567 = vld [vmem:[%s4 + $0x28] sm:$0xff]
        %v568 = vld [vmem:[%s4 + $0x30] sm:$0xff]
        %v569 = vld [vmem:[%s4 + $0x38] sm:$0xff]
        %v570 = vld [vmem:[#allocation11] sm:$0xff]
        %v571 = vld [vmem:[#allocation11 + $0x8] sm:$0xff]
        %v572 = vld [vmem:[#allocation11 + $0x10] sm:$0xff]
        %v573 = vld [vmem:[#allocation11 + $0x18] sm:$0xff]
        %v574 = vld [vmem:[%s6] sm:$0x1]
        %v575 = vld [vmem:[#allocation2] sm:$0x3]
        %vm576 = vcmask 261120
        %v578 = vsel %vm576, %v575, 0
        %580 = vmatpush.msra.mxu0 0.0
        %581 = vmatpush.msra.mxu0 0.0
        %582 = vmatpush.msra.mxu0 0.0
        %583 = vmatpush.msra.mxu0 0.0
        %584 = vmatpush.msra.mxu0 0.0
        %585 = vmatpush.msra.mxu0 0.0
        %586 = vmatpush.msra.mxu0 0.0
        %587 = vmatpush.msra.mxu0 0.0
        %588 = vmatpush.msra.mxu0 0.0
        %589 = vmatpush.msra.mxu0 0.0
        %590 = vmatpush.msra.mxu0 0.0
        %591 = vmatpush.msra.mxu0 0.0
        %592 = vmatpush.msra.mxu0 %v573
        %593 = vmatpush.msra.mxu0 %v572
        %594 = vmatpush.msra.mxu0 %v571
        %595 = vmatpush.msra.mxu0 %v570
        %596 = vmatmul.f32.gmra.mxu0 %v578
        %v597 = vpop.f32.mrf.mxu0
        %v598 = vadd.f32 0.0, %v597
        %599 = vdwg.mxu0
        %vm600 = vcmask 523264
        %v602 = vsel %vm600, %v560, 0
        %604 = vmatpush.msra.mxu0 0.0
        %605 = vmatpush.msra.mxu0 0.0
        %606 = vmatpush.msra.mxu0 0.0
        %607 = vmatpush.msra.mxu0 0.0
        %608 = vmatpush.msra.mxu0 0.0
        %609 = vmatpush.msra.mxu0 0.0
        %610 = vmatpush.msra.mxu0 0.0
        %611 = vmatpush.msra.mxu0 0.0
        %612 = vmatpush.msra.mxu0 %v569
        %613 = vmatpush.msra.mxu0 %v568
        %614 = vmatpush.msra.mxu0 %v567
        %615 = vmatpush.msra.mxu0 %v566
        %616 = vmatpush.msra.mxu0 %v565
        %617 = vmatpush.msra.mxu0 %v564
        %618 = vmatpush.msra.mxu0 %v563
        %619 = vmatpush.msra.mxu0 %v562
        %620 = vmatmul.f32.gmra.mxu0 %v602
        %v621 = vpop.f32.mrf.mxu0
        %v622 = vadd.f32 %v598, %v621
        %623 = vdwg.mxu0
        %v625 = vperm.slane %v574, 0
        %v627 = vadd.f32 %v622, %v625
        %v628 = vxor.u32 %v627, 2147483648
        %v629 = vmul.f32 %v628, 1.442695
        %v630 = vpow.pop %v629
        %v631 = vadd.f32 %v630, 1.0
        %v632 = vrcp.pop %v631
        %v633 = vmul.f32 %v631, %v632
        %v634 = vsub.f32 1.0, %v633
        %v635 = vmul.f32 %v632, %v634
        %v636 = vadd.f32 %v632, %v635
        %vm637 = vweird.f32 %v631
        %vm638 = vweird.f32 %v632
        %vm639 = vmor %vm637, %vm638
        %v640 = vsel %vm639, %v632, %v636
        %v641 = vand.u32 2147483647, %v631
        %vm642 = vcmp.eq.f32.partialorder %v641, 8.507059e+37
        %v643 = vand.u32 %v631, 2147483648
        %v644 = vor.u32 1.1754944e-38, %v643
        %v645 = vsel %vm642, %v644, %v640
        %v646 = vmul.f32 1.0, %v645
        %v647 = vtanh.pop %v627
        %v648 = vld [vmem:[#allocation3] sm:$0x3]
        %650 = vrot.lane.b32.xlu0 %v648, 32
        %v651 = vpop.permute.xlu0 %650
        %v653 = vmul.f32 %v646, %v651
        %655 = vrot.lane.b32.xlu0 %v647, 64
        %v656 = vpop.permute.xlu0 %655
        %v658 = vmul.f32 %v646, %v656
        %660 = vrot.lane.b32.xlu0 %v658, 32
        %v661 = vpop.permute.xlu0 %660
        %v663 = vadd.f32 %v653, %v661
        %v664 = vtanh.pop %v663
        %666 = vrot.lane.b32.xlu0 %v664, 64
        %v667 = vpop.permute.xlu0 %666
        %v669 = vmul.f32 %v646, %v667
        %vm670 = vcmp.gt.f32.partialorder %v561, 0.0
        %v671 = vsel %vm670, 1, 0
        %672 = vset.pattern.permute.xlu0 0
        %673 = vperm.xlu0 %672, %v671
        %v674 = vpop.permute.xlu0 %673
        %vm675 = vcmp.eq.s32.totalorder %v674, 1
        %v676 = vsel %vm675, %v663, %v651
        %678 = vrot.lane.b32.xlu0 %v676, 96
        %v679 = vpop.permute.xlu0 %678
        %vm681 = vcmask 254976
        %682 = vst.msk [vmem:[#allocation3] sm:$0x3] %vm681, %v679
        %v683 = vld [vmem:[#allocation2] sm:$0x3]
        %685 = vrot.lane.b32.xlu0 %v683, 96
        %v686 = vpop.permute.xlu0 %685
        %v688 = vsel %vm675, %v669, %v686
        %690 = vrot.lane.b32.xlu0 %v688, 32
        %v691 = vpop.permute.xlu0 %690
        %693 = vst.msk [vmem:[#allocation2] sm:$0x3] %vm681, %v691
        %v694 = vsel %vm675, %v669, 0.0
        %696 = vrot.lane.b32.xlu0 %v694, 32
        %v697 = vpop.permute.xlu0 %696
        %699 = vst.msk [vmem:[%s531] sm:$0x3] %vm681, %v697
        %v700 = vld [vmem:[%s465] sm:$0x3]
        %v701 = vld [vmem:[%s548] sm:$0x3]
        %v702 = vld [vmem:[#allocation12] sm:$0xff]
        %v703 = vld [vmem:[#allocation12 + $0x8] sm:$0xff]
        %v704 = vld [vmem:[#allocation12 + $0x10] sm:$0xff]
        %v705 = vld [vmem:[#allocation12 + $0x18] sm:$0xff]
        %v706 = vld [vmem:[#allocation12 + $0x20] sm:$0xff]
        %v707 = vld [vmem:[#allocation12 + $0x28] sm:$0xff]
        %v708 = vld [vmem:[#allocation12 + $0x30] sm:$0xff]
        %v709 = vld [vmem:[#allocation12 + $0x38] sm:$0xff]
        %v710 = vld [vmem:[#allocation14] sm:$0xff]
        %v711 = vld [vmem:[#allocation14 + $0x8] sm:$0xff]
        %v712 = vld [vmem:[#allocation14 + $0x10] sm:$0xff]
        %v713 = vld [vmem:[#allocation14 + $0x18] sm:$0xff]
        %v714 = vld [vmem:[%s9] sm:$0x1]
        %v715 = vld [vmem:[#allocation4] sm:$0x3]
        %v717 = vsel %vm576, %v715, 0
        %719 = vmatpush.msra.mxu0 0.0
        %720 = vmatpush.msra.mxu0 0.0
        %721 = vmatpush.msra.mxu0 0.0
        %722 = vmatpush.msra.mxu0 0.0
        %723 = vmatpush.msra.mxu0 0.0
        %724 = vmatpush.msra.mxu0 0.0
        %725 = vmatpush.msra.mxu0 0.0
        %726 = vmatpush.msra.mxu0 0.0
        %727 = vmatpush.msra.mxu0 0.0
        %728 = vmatpush.msra.mxu0 0.0
        %729 = vmatpush.msra.mxu0 0.0
        %730 = vmatpush.msra.mxu0 0.0
        %731 = vmatpush.msra.mxu0 %v713
        %732 = vmatpush.msra.mxu0 %v712
        %733 = vmatpush.msra.mxu0 %v711
        %734 = vmatpush.msra.mxu0 %v710
        %735 = vmatmul.f32.gmra.mxu0 %v717
        %v736 = vpop.f32.mrf.mxu0
        %v737 = vadd.f32 0.0, %v736
        %738 = vdwg.mxu0
        %v740 = vsel %vm600, %v700, 0
        %742 = vmatpush.msra.mxu0 0.0
        %743 = vmatpush.msra.mxu0 0.0
        %744 = vmatpush.msra.mxu0 0.0
        %745 = vmatpush.msra.mxu0 0.0
        %746 = vmatpush.msra.mxu0 0.0
        %747 = vmatpush.msra.mxu0 0.0
        %748 = vmatpush.msra.mxu0 0.0
        %749 = vmatpush.msra.mxu0 0.0
        %750 = vmatpush.msra.mxu0 %v709
        %751 = vmatpush.msra.mxu0 %v708
        %752 = vmatpush.msra.mxu0 %v707
        %753 = vmatpush.msra.mxu0 %v706
        %754 = vmatpush.msra.mxu0 %v705
        %755 = vmatpush.msra.mxu0 %v704
        %756 = vmatpush.msra.mxu0 %v703
        %757 = vmatpush.msra.mxu0 %v702
        %758 = vmatmul.f32.gmra.mxu0 %v740
        %v759 = vpop.f32.mrf.mxu0
        %v760 = vadd.f32 %v737, %v759
        %761 = vdwg.mxu0
        %v763 = vperm.slane %v714, 0
        %v765 = vadd.f32 %v760, %v763
        %v766 = vxor.u32 %v765, 2147483648
        %v767 = vmul.f32 %v766, 1.442695
        %v768 = vpow.pop %v767
        %v769 = vadd.f32 %v768, 1.0
        %v770 = vrcp.pop %v769
        %v771 = vmul.f32 %v769, %v770
        %v772 = vsub.f32 1.0, %v771
        %v773 = vmul.f32 %v770, %v772
        %v774 = vadd.f32 %v770, %v773
        %vm775 = vweird.f32 %v769
        %vm776 = vweird.f32 %v770
        %vm777 = vmor %vm775, %vm776
        %v778 = vsel %vm777, %v770, %v774
        %v779 = vand.u32 2147483647, %v769
        %vm780 = vcmp.eq.f32.partialorder %v779, 8.507059e+37
        %v781 = vand.u32 %v769, 2147483648
        %v782 = vor.u32 1.1754944e-38, %v781
        %v783 = vsel %vm780, %v782, %v778
        %v784 = vmul.f32 1.0, %v783
        %v785 = vtanh.pop %v765
        %v786 = vld [vmem:[#allocation5] sm:$0x3]
        %788 = vrot.lane.b32.xlu0 %v786, 32
        %v789 = vpop.permute.xlu0 %788
        %v791 = vmul.f32 %v784, %v789
        %793 = vrot.lane.b32.xlu0 %v785, 64
        %v794 = vpop.permute.xlu0 %793
        %v796 = vmul.f32 %v784, %v794
        %798 = vrot.lane.b32.xlu0 %v796, 32
        %v799 = vpop.permute.xlu0 %798
        %v801 = vadd.f32 %v791, %v799
        %v802 = vtanh.pop %v801
        %804 = vrot.lane.b32.xlu0 %v802, 64
        %v805 = vpop.permute.xlu0 %804
        %v807 = vmul.f32 %v784, %v805
        %vm808 = vcmp.gt.f32.partialorder %v701, 0.0
        %v809 = vsel %vm808, 1, 0
        %810 = vset.pattern.permute.xlu0 0
        %811 = vperm.xlu0 %810, %v809
        %v812 = vpop.permute.xlu0 %811
        %vm813 = vcmp.eq.s32.totalorder %v812, 1
        %v814 = vsel %vm813, %v801, %v789
        %816 = vrot.lane.b32.xlu0 %v814, 96
        %v817 = vpop.permute.xlu0 %816
        %819 = vst.msk [vmem:[#allocation5] sm:$0x3] %vm681, %v817
        %v820 = vld [vmem:[#allocation4] sm:$0x3]
        %822 = vrot.lane.b32.xlu0 %v820, 96
        %v823 = vpop.permute.xlu0 %822
        %v825 = vsel %vm813, %v807, %v823
        %827 = vrot.lane.b32.xlu0 %v825, 32
        %v828 = vpop.permute.xlu0 %827
        %830 = vst.msk [vmem:[#allocation4] sm:$0x3] %vm681, %v828
        %v831 = vsel %vm813, %v807, 0.0
        %833 = vrot.lane.b32.xlu0 %v831, 32
        %v834 = vpop.permute.xlu0 %833
        %836 = vst.msk [vmem:[%s538] sm:$0x3] %vm681, %v834
        %s837 = sand.u32 %s278, 1
        %s838 = scalar_lea.sflag [#allocation8], %s837
        %s839 = sand.u32 %s278, 1
        %s840 = smul.addr %s839, 2
        %s841 = scalar_lea.vmem [#allocation15], %s840
        %s842 = sand.u32 %s306, 1
        %s843 = scalar_lea.sflag [#allocation17], %s842
        %s844 = sand.u32 %s306, 1
        %s845 = smul.addr %s844, 2
        %s846 = scalar_lea.vmem [#allocation16], %s845
        // Predicated region
        $region85: #{tpu_custom_call.1} parent=59 // pred_check
          %p847 = pneg %p288
        $region86: #{tpu_custom_call.1} parent=59 // pred_check_branch
          %849 = sbr.rel (%p847) target = $region88
        $region87: #{tpu_custom_call.1} parent=59 // pred_region
          %851 = vsyncadd %s838, 0
          %s852 = smul.addr %s36, 2
          %s853 = scalar_lea.hbm %s10, %s852
          %s855 = sshll.u32 %s841, 4
          %s856 = int_to_ptr.vmem [resolvable:$true] %s855
          %s857 = sshll.u32 %s853, 4
          %s858 = int_to_ptr.hbm [resolvable:$true] %s857
          %860 = dma.vmem_to_hbm [thread:$0]  %s856, 32, %s858, %s838
        $region88: #{tpu_custom_call.1} parent=59 // pred_fallthru
          _
        // Predicated region
        $region89: #{tpu_custom_call.1} parent=59 // pred_check
          %p861 = pneg %p316
        $region90: #{tpu_custom_call.1} parent=59 // pred_check_branch
          %863 = sbr.rel (%p861) target = $region92
        $region91: #{tpu_custom_call.1} parent=59 // pred_region
          %s864 = ssub.s32 15, %s36
          %866 = vsyncadd %s843, 0
          %s867 = smul.addr %s864, 2
          %s868 = scalar_lea.hbm %s11, %s867
          %s870 = sshll.u32 %s846, 4
          %s871 = int_to_ptr.vmem [resolvable:$true] %s870
          %s872 = sshll.u32 %s868, 4
          %s873 = int_to_ptr.hbm [resolvable:$true] %s872
          %875 = dma.vmem_to_hbm [thread:$0]  %s871, 32, %s873, %s843
        $region92: #{tpu_custom_call.1} parent=59 // pred_fallthru
          _
      $region60: #{tpu_custom_call.1} parent=5 // pred_fallthru
        _
      %p876 = scmp.le.s32.totalorder 2, %s31
      // Predicated region
      $region93: #{tpu_custom_call.1} parent=5 // pred_check
        %p877 = pneg %p876
      $region94: #{tpu_custom_call.1} parent=5 // pred_check_branch
        %879 = sbr.rel (%p877) target = $region96
      $region95: #{tpu_custom_call.1} parent=5 // pred_region
        %s880 = ssub.s32 %s31, 2
        // Predicated region
        $region97: #{tpu_custom_call.1} parent=95 // pred_check
          %p881 = pneg %p294
        $region98: #{tpu_custom_call.1} parent=95 // pred_check_branch
          %883 = sbr.rel (%p881) target = $region100
        $region99: #{tpu_custom_call.1} parent=95 // pred_region
          %s884 = sand.u32 %s279, 1
          %s885 = scalar_lea.sflag [#allocation8], %s884
          %s886 = sand.u32 %s279, 1
          %s887 = smul.addr %s886, 2
          %s888 = scalar_lea.vmem [#allocation15], %s887
          %890 = dma.done %s885, 32
        $region100: #{tpu_custom_call.1} parent=95 // pred_fallthru
          _
        // Predicated region
        $region101: #{tpu_custom_call.1} parent=95 // pred_check
          %p891 = pneg %p322
        $region102: #{tpu_custom_call.1} parent=95 // pred_check_branch
          %893 = sbr.rel (%p891) target = $region104
        $region103: #{tpu_custom_call.1} parent=95 // pred_region
          %s894 = sand.u32 %s307, 1
          %s895 = scalar_lea.sflag [#allocation17], %s894
          %s896 = sand.u32 %s307, 1
          %s897 = smul.addr %s896, 2
          %s898 = scalar_lea.vmem [#allocation16], %s897
          %900 = dma.done %s895, 32
        $region104: #{tpu_custom_call.1} parent=95 // pred_fallthru
          _
      $region96: #{tpu_custom_call.1} parent=5 // pred_fallthru
        _
    $region6: #{tpu_custom_call.1} parent=1 // loop_footer
      %s35 = sadd.s32 1, %s31
    $region7: #{tpu_custom_call.1} parent=1 // loop_footer_branch
      %30 = sbr.rel target = $region3
    $region8: #{tpu_custom_call.1} parent=1 // loop_exit
      _
    %901 = vsyncpa [#allocation7], 1
    %s902 = scalar_lea.sflag [#allocation7], 1
    %903 = vsyncpa %s902, 1
    %904 = vsyncpa [#allocation10], 1
    %s905 = scalar_lea.sflag [#allocation10], 1
    %906 = vsyncpa %s905, 1
    %907 = vsyncpa [#allocation13], 1
    %908 = vsyncpa [#allocation8], 1
    %s909 = scalar_lea.sflag [#allocation8], 1
    %910 = vsyncpa %s909, 1
    %911 = vsyncpa [#allocation17], 1
    %s912 = scalar_lea.sflag [#allocation17], 1
    %913 = vsyncpa %s912, 1

</llo_original>
